<compile_context>
chip_gen: v7x
topology: tpu7x:2x2x1
jax: 0.10.0
libtpu: 0.0.40
codegen_flags: <defaults>
</compile_context>

<pallas_src>
import jax
import jax.numpy as jnp
from jax.experimental import pallas as pl
from jax.experimental.pallas import tpu as pltpu


def _cdiv(a, b):
    return -(-a // b)


# ----------------------------------------------------------------------------
# Kernel
# ----------------------------------------------------------------------------
def _make_kernel(N, E, KD, TB, pairs):
    """Refs:
         x_ref    : (TB, N*E)        feature block, lane-dense
         wqkv_ref : (N*E, N*(2KD+1)) block-diagonal fused [Wq_eff | Wk | Wv]
         sel_ref  : (N, N*E)         0/1 gate-expansion matrix
         wbd_ref  : (N*E, N*E)       block-diagonal bilinear weight
         out_ref  : (TB, P*E)        lane-dense output block
       scratch:
         filt_ref / t_ref : (TB, N*E) lane-dense
    """
    NE = N * E
    P = len(pairs)
    # pairs per store group: G*E == 128 -> aligned, unmasked 128-lane stores.
    G = 128 // E if (E < 128 and 128 % E == 0) else 1

    def kernel(x_ref, wqkv_ref, sel_ref, wbd_ref, out_ref, filt_ref, t_ref):
        # ---- fused block-diagonal q/k/v projection: one matmul for all fields ----
        qkv = jnp.dot(x_ref[...], wqkv_ref[...],
                      preferred_element_type=jnp.float32)            # (TB, N*(2KD+1))

        # columns: [q_kd0 .. q_kd{KD-1} | k_kd0 .. k_kd{KD-1} | v], each group N lanes
        v = qkv[:, 2 * KD * N:2 * KD * N + N]                         # (TB, N)

        # ---- lambda = softmax_fields(k)^T v  (per kd), then y_i = q_i . lambda ----
        y = jnp.zeros((TB, N), jnp.float32)
        for kd in range(KD):
            q_kd = qkv[:, kd * N:(kd + 1) * N]                        # (TB, N)
            k_kd = qkv[:, (KD + kd) * N:(KD + kd + 1) * N]            # (TB, N)
            kmax = jnp.max(k_kd, axis=-1, keepdims=True)              # XLU reduce
            ek = jnp.exp(k_kd - kmax)
            den = jnp.sum(ek, axis=-1, keepdims=True)
            num = jnp.sum(ek * v, axis=-1, keepdims=True)
            # exact reciprocal (NOT approx): gate is a sign threshold on q . lambda
            y = y + q_kd * (num * pl.reciprocal(den))

        # ---- gate = LTE(tanh(y)); tanh monotone with tanh(0)=0  =>  (y > 0) ----
        # TODO(synk): LTETransform source not provided; forward assumed = (x > 0) -> 1.0
        gate = jnp.where(y > 0.0, 1.0, 0.0)                           # (TB, N), exact 0/1
        # expand per-field gate to lane-dense (TB, N*E) with an exact 0/1 selection matmul
        gate_exp = jnp.dot(gate, sel_ref[...],
                           preferred_element_type=jnp.float32)        # (TB, NE)
        filt_ref[...] = x_ref[...] * gate_exp                         # filter = feature * gate

        # ---- field-each bilinear as ONE block-diagonal matmul: t = filt @ blockdiag(W_i) ----
        t_ref[...] = jnp.dot(filt_ref[...], wbd_ref[...],
                             preferred_element_type=jnp.float32)      # (TB, NE)

        # ---- pair products: 128-lane groups, full-width multiply, aligned stores ----
        for base in range(0, P, G):
            cnt = min(G, P - base)
            lparts, rparts = [], []
            for g in range(cnt):
                i, j = pairs[base + g]
                lparts.append(t_ref[:, i * E:(i + 1) * E])            # (TB, E)
                rparts.append(filt_ref[:, j * E:(j + 1) * E])         # (TB, E)
            left = lparts[0] if cnt == 1 else jnp.concatenate(lparts, axis=-1)
            right = rparts[0] if cnt == 1 else jnp.concatenate(rparts, axis=-1)
            out_ref[:, base * E:(base + cnt) * E] = (left * right).astype(out_ref.dtype)

    return kernel


# ----------------------------------------------------------------------------
# Wrapper
# ----------------------------------------------------------------------------
def lambda_interaction_forward(feature, wq, wk, wv, wbi, head_num,
                               block_b=512, out_dtype=jnp.float32):
    """feature (B, N, E); wq (E, H*KD); wk (E, KD); wv (E, 1); wbi (N, E, E)."""
    B, N, E = feature.shape
    KD = E // head_num
    NE = N * E
    pairs = tuple((i, j) for i in range(N) for j in range(i + 1, N))
    P = len(pairs)
    PE = P * E
    C = N * (2 * KD + 1)

    # Batch tile: big tiles amortize the ~0.35us/step fixed cost, but keep >= 2 grid
    # steps when possible so both v7x TensorCores get work.
    TB = min(block_b, B)
    if B > 8 and _cdiv(B, TB) < 2:
        TB = _cdiv(B, 2)
    TB = max(8, ((TB + 7) // 8) * 8)
    Bp = _cdiv(B, TB) * TB

    # Lane-dense view of the features (free reshape; no HBM transpose).
    x2 = feature.reshape(B, NE)
    if Bp != B:
        x2 = jnp.pad(x2, ((0, Bp - B), (0, 0)))

    # Fused QKV block-diagonal weight; head-mean (1/H sum_h) folded into Wq.
    wq_eff = wq.reshape(E, head_num, KD).mean(axis=1)                 # (E, KD)
    wqkv = jnp.zeros((NE, C), jnp.float32)
    for i in range(N):
        r0 = i * E
        for kd in range(KD):
            wqkv = wqkv.at[r0:r0 + E, kd * N + i].set(wq_eff[:, kd])
            wqkv = wqkv.at[r0:r0 + E, (KD + kd) * N + i].set(wk[:, kd])
        wqkv = wqkv.at[r0:r0 + E, 2 * KD * N + i].set(wv[:, 0])

    # 0/1 gate-expansion matrix and block-diagonal bilinear weight (built once, resident).
    sel = jnp.repeat(jnp.eye(N, dtype=jnp.float32), E, axis=1)        # (N, NE)
    wbd = jax.scipy.linalg.block_diag(*[wbi[i] for i in range(N)])    # (NE, NE)

    kernel = _make_kernel(N, E, KD, TB, pairs)

    # Explicit VMEM budget: double-buffered in/out + resident weights + scratch + slack.
    est = (2 * (TB * NE + TB * PE + NE * C + N * NE + NE * NE) + 2 * TB * NE) * 4 + (8 << 20)
    vmem_limit = int(min(max(est, 32 << 20), 64 << 20))               # <=64MiB: safe on v7x

    out2d = pl.pallas_call(
        kernel,
        out_shape=jax.ShapeDtypeStruct((Bp, PE), out_dtype),
        grid_spec=pltpu.PrefetchScalarGridSpec(
            num_scalar_prefetch=0,
            grid=(Bp // TB,),
            in_specs=[
                pl.BlockSpec((TB, NE), lambda b: (b, 0)),             # features (lane-dense)
                pl.BlockSpec((NE, C), lambda b: (0, 0)),              # fused QKV weight
                pl.BlockSpec((N, NE), lambda b: (0, 0)),              # gate expansion matrix
                pl.BlockSpec((NE, NE), lambda b: (0, 0)),             # block-diag bilinear
            ],
            out_specs=pl.BlockSpec((TB, PE), lambda b: (b, 0)),       # lane-dense output
            scratch_shapes=[
                pltpu.VMEM((TB, NE), jnp.float32),                    # filt (lane-dense)
                pltpu.VMEM((TB, NE), jnp.float32),                    # t = filt @ blockdiag(W)
            ],
        ),
        compiler_params=pltpu.CompilerParams(
            dimension_semantics=("parallel",),
            vmem_limit_bytes=vmem_limit),
    )(x2, wqkv, sel, wbd)

    return out2d[:B].reshape(B, P, E)


# ----------------------------------------------------------------------------
# Pure-JAX reference (same math) for correctness checking.
# ----------------------------------------------------------------------------
def reference_forward(feature, wq, wk, wv, wbi, head_num):
    B, N, E = feature.shape
    KD = E // head_num
    q = jnp.einsum('bne,ef->bnf', feature, wq)
    k = jnp.einsum('bne,ek->bnk', feature, wk)
    v = jnp.einsum('bne,eo->bno', feature, wv)
    ksoft = jax.nn.softmax(k, axis=1)
    lam = jnp.einsum('bnk,bno->bko', ksoft, v)
    qr = q.reshape(B, N, head_num, KD)
    y = jnp.einsum('bnhk,bko->bnho', qr, lam).mean(axis=2)   # (B, N, 1)
    gate = jnp.where(jnp.tanh(y) > 0.0, 1.0, 0.0)
    filt = feature * gate
    t = jnp.einsum('bne,nef->bnf', filt, wbi)
    idx_i, idx_j = [], []
    for i in range(N):
        for j in range(i + 1, N):
            idx_i.append(i)
            idx_j.append(j)
    idx_i = jnp.array(idx_i)
    idx_j = jnp.array(idx_j)
    return t[:, idx_i, :] * filt[:, idx_j, :]


if __name__ == "__main__":
    # Small, module-consistent shapes (batch split into two grid steps of 8 rows).
    B, N, E, H = 16, 8, 32, 16        # batch, featureNumb, embedSize, headNum
    KD = E // H

    key = jax.random.PRNGKey(0)
    k_feat, k_wq, k_wk, k_wv, k_wbi = jax.random.split(key, 5)

    feature = jax.random.normal(k_feat, (B, N, E), dtype=jnp.float32)
    wq = 0.1 * jax.random.normal(k_wq, (E, H * KD), dtype=jnp.float32)
    wk = 0.1 * jax.random.normal(k_wk, (E, KD), dtype=jnp.float32)
    wv = 0.1 * jax.random.normal(k_wv, (E, 1), dtype=jnp.float32)
    wbi = 0.1 * jax.random.normal(k_wbi, (N, E, E), dtype=jnp.float32)

    out = lambda_interaction_forward(feature, wq, wk, wv, wbi, H)
    out = jax.block_until_ready(out)

    ref = reference_forward(feature, wq, wk, wv, wbi, H)
    assert out.shape == (B, N * (N - 1) // 2, E), out.shape
    assert jnp.allclose(out, ref, atol=1e-3, rtol=1e-3), \
        float(jnp.max(jnp.abs(out - ref)))

    print("KERNEL_OK")
</pallas_src>

<mosaic_0001>
module attributes {stable_mosaic.version = 11 : i64} {
  func.func @kernel(%arg0: i32, %arg1: memref<8x256xf32, #tpu.memory_space<vmem>>, %arg2: memref<256x40xf32, #tpu.memory_space<vmem>>, %arg3: memref<8x256xf32, #tpu.memory_space<vmem>>, %arg4: memref<256x256xf32, #tpu.memory_space<vmem>>, %arg5: memref<8x896xf32, #tpu.memory_space<vmem>>, %arg6: memref<8x256xf32, #tpu.memory_space<vmem>>, %arg7: memref<8x256xf32, #tpu.memory_space<vmem>>) attributes {dimension_semantics = [#tpu.dimension_semantics<parallel>], iteration_bounds = array<i64: 2>, scalar_prefetch = 0 : i64, scratch_operands = 2 : i64, tpu.core_type = #tpu.core_type<tc>, window_params = [{transform_indices = @transform_0, window_bounds = array<i64: 8, 256>}, {pipeline_mode = #tpu.pipeline_mode<synchronous>, transform_indices = @transform_1, window_bounds = array<i64: 256, 40>}, {pipeline_mode = #tpu.pipeline_mode<synchronous>, transform_indices = @transform_2, window_bounds = array<i64: 8, 256>}, {pipeline_mode = #tpu.pipeline_mode<synchronous>, transform_indices = @transform_3, window_bounds = array<i64: 256, 256>}, {transform_indices = @transform_4, window_bounds = array<i64: 8, 896>}]} {
    %c0 = arith.constant 0 : index
    %c0_0 = arith.constant 0 : index
    %0 = vector.load %arg1[%c0, %c0_0] : memref<8x256xf32, #tpu.memory_space<vmem>>, vector<8x256xf32>
    %c0_1 = arith.constant 0 : index
    %c0_2 = arith.constant 0 : index
    %1 = vector.load %arg2[%c0_1, %c0_2] : memref<256x40xf32, #tpu.memory_space<vmem>>, vector<256x40xf32>
    %cst = arith.constant dense<0.000000e+00> : vector<8x40xf32>
    %2 = tpu.matmul %0, %1, %cst {dimension_numbers = #tpu.dot_dimension_numbers<[1], [0], [0], [1], [0, 0, 1, 1], [], []>} : vector<8x256xf32>, vector<256x40xf32>, vector<8x40xf32> -> vector<8x40xf32>
    %3 = vector.extract_strided_slice %2 {offsets = [0, 32], sizes = [8, 8], strides = [1, 1]} : vector<8x40xf32> to vector<8x8xf32>
    %cst_3 = arith.constant 0.000000e+00 : f32
    %4 = vector.broadcast %cst_3 : f32 to vector<8x8xf32>
    %5 = vector.extract_strided_slice %2 {offsets = [0, 0], sizes = [8, 8], strides = [1, 1]} : vector<8x40xf32> to vector<8x8xf32>
    %6 = vector.extract_strided_slice %2 {offsets = [0, 16], sizes = [8, 8], strides = [1, 1]} : vector<8x40xf32> to vector<8x8xf32>
    %cst_4 = arith.constant dense<0xFF800000> : vector<8xf32>
    %7 = vector.multi_reduction <maximumf>, %6, %cst_4 [1] : vector<8x8xf32> to vector<8xf32>
    %8 = vector.shape_cast %7 : vector<8xf32> to vector<8x1xf32>
    %9 = vector.broadcast %8 : vector<8x1xf32> to vector<8x8xf32>
    %10 = arith.subf %6, %9 : vector<8x8xf32>
    %11 = math.exp %10 : vector<8x8xf32>
    %cst_5 = arith.constant dense<0.000000e+00> : vector<8xf32>
    %12 = vector.multi_reduction <add>, %11, %cst_5 [1] : vector<8x8xf32> to vector<8xf32>
    %13 = vector.shape_cast %12 : vector<8xf32> to vector<8x1xf32>
    %14 = arith.mulf %11, %3 : vector<8x8xf32>
    %cst_6 = arith.constant dense<0.000000e+00> : vector<8xf32>
    %15 = vector.multi_reduction <add>, %14, %cst_6 [1] : vector<8x8xf32> to vector<8xf32>
    %16 = vector.shape_cast %15 : vector<8xf32> to vector<8x1xf32>
    %17 = tpu.reciprocal %13 : vector<8x1xf32> -> vector<8x1xf32>
    %18 = arith.mulf %16, %17 : vector<8x1xf32>
    %19 = vector.broadcast %18 : vector<8x1xf32> to vector<8x8xf32>
    %20 = arith.mulf %5, %19 : vector<8x8xf32>
    %21 = arith.addf %4, %20 : vector<8x8xf32>
    %22 = vector.extract_strided_slice %2 {offsets = [0, 8], sizes = [8, 8], strides = [1, 1]} : vector<8x40xf32> to vector<8x8xf32>
    %23 = vector.extract_strided_slice %2 {offsets = [0, 24], sizes = [8, 8], strides = [1, 1]} : vector<8x40xf32> to vector<8x8xf32>
    %cst_7 = arith.constant dense<0xFF800000> : vector<8xf32>
    %24 = vector.multi_reduction <maximumf>, %23, %cst_7 [1] : vector<8x8xf32> to vector<8xf32>
    %25 = vector.shape_cast %24 : vector<8xf32> to vector<8x1xf32>
    %26 = vector.broadcast %25 : vector<8x1xf32> to vector<8x8xf32>
    %27 = arith.subf %23, %26 : vector<8x8xf32>
    %28 = math.exp %27 : vector<8x8xf32>
    %cst_8 = arith.constant dense<0.000000e+00> : vector<8xf32>
    %29 = vector.multi_reduction <add>, %28, %cst_8 [1] : vector<8x8xf32> to vector<8xf32>
    %30 = vector.shape_cast %29 : vector<8xf32> to vector<8x1xf32>
    %31 = arith.mulf %28, %3 : vector<8x8xf32>
    %cst_9 = arith.constant dense<0.000000e+00> : vector<8xf32>
    %32 = vector.multi_reduction <add>, %31, %cst_9 [1] : vector<8x8xf32> to vector<8xf32>
    %33 = vector.shape_cast %32 : vector<8xf32> to vector<8x1xf32>
    %34 = tpu.reciprocal %30 : vector<8x1xf32> -> vector<8x1xf32>
    %35 = arith.mulf %33, %34 : vector<8x1xf32>
    %36 = vector.broadcast %35 : vector<8x1xf32> to vector<8x8xf32>
    %37 = arith.mulf %22, %36 : vector<8x8xf32>
    %38 = arith.addf %21, %37 : vector<8x8xf32>
    %cst_10 = arith.constant 0.000000e+00 : f32
    %39 = vector.broadcast %cst_10 : f32 to vector<8x8xf32>
    %40 = arith.cmpf ogt, %38, %39 : vector<8x8xf32>
    %cst_11 = arith.constant 1.000000e+00 : f32
    %cst_12 = arith.constant 0.000000e+00 : f32
    %41 = vector.broadcast %cst_11 : f32 to vector<8x8xf32>
    %42 = vector.broadcast %cst_12 : f32 to vector<8x8xf32>
    %43 = arith.select %40, %41, %42 : vector<8x8xi1>, vector<8x8xf32>
    %c0_13 = arith.constant 0 : index
    %c0_14 = arith.constant 0 : index
    %44 = vector.load %arg3[%c0_13, %c0_14] : memref<8x256xf32, #tpu.memory_space<vmem>>, vector<8x256xf32>
    %cst_15 = arith.constant dense<0.000000e+00> : vector<8x256xf32>
    %45 = tpu.matmul %43, %44, %cst_15 {dimension_numbers = #tpu.dot_dimension_numbers<[1], [0], [0], [1], [0, 0, 1, 1], [], []>} : vector<8x8xf32>, vector<8x256xf32>, vector<8x256xf32> -> vector<8x256xf32>
    %c0_16 = arith.constant 0 : index
    %c0_17 = arith.constant 0 : index
    %46 = vector.load %arg1[%c0_16, %c0_17] : memref<8x256xf32, #tpu.memory_space<vmem>>, vector<8x256xf32>
    %47 = arith.mulf %46, %45 : vector<8x256xf32>
    %c0_18 = arith.constant 0 : index
    %c0_19 = arith.constant 0 : index
    %48 = vector.load %arg6[%c0_18, %c0_19] : memref<8x256xf32, #tpu.memory_space<vmem>>, vector<8x256xf32>
    tpu.vector_store %arg6[%c0_18, %c0_19], %47 {strides = array<i32>} : memref<8x256xf32, #tpu.memory_space<vmem>>, vector<8x256xf32>,
    %c0_20 = arith.constant 0 : index
    %c0_21 = arith.constant 0 : index
    %49 = vector.load %arg6[%c0_20, %c0_21] : memref<8x256xf32, #tpu.memory_space<vmem>>, vector<8x256xf32>
    %c0_22 = arith.constant 0 : index
    %c0_23 = arith.constant 0 : index
    %50 = vector.load %arg4[%c0_22, %c0_23] : memref<256x256xf32, #tpu.memory_space<vmem>>, vector<256x256xf32>
    %cst_24 = arith.constant dense<0.000000e+00> : vector<8x256xf32>
    %51 = tpu.matmul %49, %50, %cst_24 {dimension_numbers = #tpu.dot_dimension_numbers<[1], [0], [0], [1], [0, 0, 1, 1], [], []>} : vector<8x256xf32>, vector<256x256xf32>, vector<8x256xf32> -> vector<8x256xf32>
    %c0_25 = arith.constant 0 : index
    %c0_26 = arith.constant 0 : index
    %52 = vector.load %arg7[%c0_25, %c0_26] : memref<8x256xf32, #tpu.memory_space<vmem>>, vector<8x256xf32>
    tpu.vector_store %arg7[%c0_25, %c0_26], %51 {strides = array<i32>} : memref<8x256xf32, #tpu.memory_space<vmem>>, vector<8x256xf32>,
    %c0_27 = arith.constant 0 : index
    %c0_28 = arith.constant 0 : index
    %53 = vector.load %arg7[%c0_27, %c0_28] : memref<8x256xf32, #tpu.memory_space<vmem>>, vector<8x32xf32>
    %c0_29 = arith.constant 0 : index
    %c32 = arith.constant 32 : index
    %54 = vector.load %arg6[%c0_29, %c32] : memref<8x256xf32, #tpu.memory_space<vmem>>, vector<8x32xf32>
    %c0_30 = arith.constant 0 : index
    %c0_31 = arith.constant 0 : index
    %55 = vector.load %arg7[%c0_30, %c0_31] : memref<8x256xf32, #tpu.memory_space<vmem>>, vector<8x32xf32>
    %c0_32 = arith.constant 0 : index
    %c64 = arith.constant 64 : index
    %56 = vector.load %arg6[%c0_32, %c64] : memref<8x256xf32, #tpu.memory_space<vmem>>, vector<8x32xf32>
    %c0_33 = arith.constant 0 : index
    %c0_34 = arith.constant 0 : index
    %57 = vector.load %arg7[%c0_33, %c0_34] : memref<8x256xf32, #tpu.memory_space<vmem>>, vector<8x32xf32>
    %c0_35 = arith.constant 0 : index
    %c96 = arith.constant 96 : index
    %58 = vector.load %arg6[%c0_35, %c96] : memref<8x256xf32, #tpu.memory_space<vmem>>, vector<8x32xf32>
    %c0_36 = arith.constant 0 : index
    %c0_37 = arith.constant 0 : index
    %59 = vector.load %arg7[%c0_36, %c0_37] : memref<8x256xf32, #tpu.memory_space<vmem>>, vector<8x32xf32>
    %c0_38 = arith.constant 0 : index
    %c128 = arith.constant 128 : index
    %60 = vector.load %arg6[%c0_38, %c128] : memref<8x256xf32, #tpu.memory_space<vmem>>, vector<8x32xf32>
    %61 = tpu.concatenate %53, %55, %57, %59 in 1 : vector<8x32xf32>, vector<8x32xf32>, vector<8x32xf32>, vector<8x32xf32> -> vector<8x128xf32>
    %62 = tpu.concatenate %54, %56, %58, %60 in 1 : vector<8x32xf32>, vector<8x32xf32>, vector<8x32xf32>, vector<8x32xf32> -> vector<8x128xf32>
    %63 = arith.mulf %61, %62 : vector<8x128xf32>
    %c0_39 = arith.constant 0 : index
    %c0_40 = arith.constant 0 : index
    %64 = vector.load %arg5[%c0_39, %c0_40] : memref<8x896xf32, #tpu.memory_space<vmem>>, vector<8x128xf32>
    tpu.vector_store %arg5[%c0_39, %c0_40], %63 {strides = array<i32>} : memref<8x896xf32, #tpu.memory_space<vmem>>, vector<8x128xf32>,
    %c0_41 = arith.constant 0 : index
    %c0_42 = arith.constant 0 : index
    %65 = vector.load %arg7[%c0_41, %c0_42] : memref<8x256xf32, #tpu.memory_space<vmem>>, vector<8x32xf32>
    %c0_43 = arith.constant 0 : index
    %c160 = arith.constant 160 : index
    %66 = vector.load %arg6[%c0_43, %c160] : memref<8x256xf32, #tpu.memory_space<vmem>>, vector<8x32xf32>
    %c0_44 = arith.constant 0 : index
    %c0_45 = arith.constant 0 : index
    %67 = vector.load %arg7[%c0_44, %c0_45] : memref<8x256xf32, #tpu.memory_space<vmem>>, vector<8x32xf32>
    %c0_46 = arith.constant 0 : index
    %c192 = arith.constant 192 : index
    %68 = vector.load %arg6[%c0_46, %c192] : memref<8x256xf32, #tpu.memory_space<vmem>>, vector<8x32xf32>
    %c0_47 = arith.constant 0 : index
    %c0_48 = arith.constant 0 : index
    %69 = vector.load %arg7[%c0_47, %c0_48] : memref<8x256xf32, #tpu.memory_space<vmem>>, vector<8x32xf32>
    %c0_49 = arith.constant 0 : index
    %c224 = arith.constant 224 : index
    %70 = vector.load %arg6[%c0_49, %c224] : memref<8x256xf32, #tpu.memory_space<vmem>>, vector<8x32xf32>
    %c0_50 = arith.constant 0 : index
    %c32_51 = arith.constant 32 : index
    %71 = vector.load %arg7[%c0_50, %c32_51] : memref<8x256xf32, #tpu.memory_space<vmem>>, vector<8x32xf32>
    %c0_52 = arith.constant 0 : index
    %c64_53 = arith.constant 64 : index
    %72 = vector.load %arg6[%c0_52, %c64_53] : memref<8x256xf32, #tpu.memory_space<vmem>>, vector<8x32xf32>
    %73 = tpu.concatenate %65, %67, %69, %71 in 1 : vector<8x32xf32>, vector<8x32xf32>, vector<8x32xf32>, vector<8x32xf32> -> vector<8x128xf32>
    %74 = tpu.concatenate %66, %68, %70, %72 in 1 : vector<8x32xf32>, vector<8x32xf32>, vector<8x32xf32>, vector<8x32xf32> -> vector<8x128xf32>
    %75 = arith.mulf %73, %74 : vector<8x128xf32>
    %c0_54 = arith.constant 0 : index
    %c128_55 = arith.constant 128 : index
    %76 = vector.load %arg5[%c0_54, %c128_55] : memref<8x896xf32, #tpu.memory_space<vmem>>, vector<8x128xf32>
    tpu.vector_store %arg5[%c0_54, %c128_55], %75 {strides = array<i32>} : memref<8x896xf32, #tpu.memory_space<vmem>>, vector<8x128xf32>,
    %c0_56 = arith.constant 0 : index
    %c32_57 = arith.constant 32 : index
    %77 = vector.load %arg7[%c0_56, %c32_57] : memref<8x256xf32, #tpu.memory_space<vmem>>, vector<8x32xf32>
    %c0_58 = arith.constant 0 : index
    %c96_59 = arith.constant 96 : index
    %78 = vector.load %arg6[%c0_58, %c96_59] : memref<8x256xf32, #tpu.memory_space<vmem>>, vector<8x32xf32>
    %c0_60 = arith.constant 0 : index
    %c32_61 = arith.constant 32 : index
    %79 = vector.load %arg7[%c0_60, %c32_61] : memref<8x256xf32, #tpu.memory_space<vmem>>, vector<8x32xf32>
    %c0_62 = arith.constant 0 : index
    %c128_63 = arith.constant 128 : index
    %80 = vector.load %arg6[%c0_62, %c128_63] : memref<8x256xf32, #tpu.memory_space<vmem>>, vector<8x32xf32>
    %c0_64 = arith.constant 0 : index
    %c32_65 = arith.constant 32 : index
    %81 = vector.load %arg7[%c0_64, %c32_65] : memref<8x256xf32, #tpu.memory_space<vmem>>, vector<8x32xf32>
    %c0_66 = arith.constant 0 : index
    %c160_67 = arith.constant 160 : index
    %82 = vector.load %arg6[%c0_66, %c160_67] : memref<8x256xf32, #tpu.memory_space<vmem>>, vector<8x32xf32>
    %c0_68 = arith.constant 0 : index
    %c32_69 = arith.constant 32 : index
    %83 = vector.load %arg7[%c0_68, %c32_69] : memref<8x256xf32, #tpu.memory_space<vmem>>, vector<8x32xf32>
    %c0_70 = arith.constant 0 : index
    %c192_71 = arith.constant 192 : index
    %84 = vector.load %arg6[%c0_70, %c192_71] : memref<8x256xf32, #tpu.memory_space<vmem>>, vector<8x32xf32>
    %85 = tpu.concatenate %77, %79, %81, %83 in 1 : vector<8x32xf32>, vector<8x32xf32>, vector<8x32xf32>, vector<8x32xf32> -> vector<8x128xf32>
    %86 = tpu.concatenate %78, %80, %82, %84 in 1 : vector<8x32xf32>, vector<8x32xf32>, vector<8x32xf32>, vector<8x32xf32> -> vector<8x128xf32>
    %87 = arith.mulf %85, %86 : vector<8x128xf32>
    %c0_72 = arith.constant 0 : index
    %c256 = arith.constant 256 : index
    %88 = vector.load %arg5[%c0_72, %c256] : memref<8x896xf32, #tpu.memory_space<vmem>>, vector<8x128xf32>
    tpu.vector_store %arg5[%c0_72, %c256], %87 {strides = array<i32>} : memref<8x896xf32, #tpu.memory_space<vmem>>, vector<8x128xf32>,
    %c0_73 = arith.constant 0 : index
    %c32_74 = arith.constant 32 : index
    %89 = vector.load %arg7[%c0_73, %c32_74] : memref<8x256xf32, #tpu.memory_space<vmem>>, vector<8x32xf32>
    %c0_75 = arith.constant 0 : index
    %c224_76 = arith.constant 224 : index
    %90 = vector.load %arg6[%c0_75, %c224_76] : memref<8x256xf32, #tpu.memory_space<vmem>>, vector<8x32xf32>
    %c0_77 = arith.constant 0 : index
    %c64_78 = arith.constant 64 : index
    %91 = vector.load %arg7[%c0_77, %c64_78] : memref<8x256xf32, #tpu.memory_space<vmem>>, vector<8x32xf32>
    %c0_79 = arith.constant 0 : index
    %c96_80 = arith.constant 96 : index
    %92 = vector.load %arg6[%c0_79, %c96_80] : memref<8x256xf32, #tpu.memory_space<vmem>>, vector<8x32xf32>
    %c0_81 = arith.constant 0 : index
    %c64_82 = arith.constant 64 : index
    %93 = vector.load %arg7[%c0_81, %c64_82] : memref<8x256xf32, #tpu.memory_space<vmem>>, vector<8x32xf32>
    %c0_83 = arith.constant 0 : index
    %c128_84 = arith.constant 128 : index
    %94 = vector.load %arg6[%c0_83, %c128_84] : memref<8x256xf32, #tpu.memory_space<vmem>>, vector<8x32xf32>
    %c0_85 = arith.constant 0 : index
    %c64_86 = arith.constant 64 : index
    %95 = vector.load %arg7[%c0_85, %c64_86] : memref<8x256xf32, #tpu.memory_space<vmem>>, vector<8x32xf32>
    %c0_87 = arith.constant 0 : index
    %c160_88 = arith.constant 160 : index
    %96 = vector.load %arg6[%c0_87, %c160_88] : memref<8x256xf32, #tpu.memory_space<vmem>>, vector<8x32xf32>
    %97 = tpu.concatenate %89, %91, %93, %95 in 1 : vector<8x32xf32>, vector<8x32xf32>, vector<8x32xf32>, vector<8x32xf32> -> vector<8x128xf32>
    %98 = tpu.concatenate %90, %92, %94, %96 in 1 : vector<8x32xf32>, vector<8x32xf32>, vector<8x32xf32>, vector<8x32xf32> -> vector<8x128xf32>
    %99 = arith.mulf %97, %98 : vector<8x128xf32>
    %c0_89 = arith.constant 0 : index
    %c384 = arith.constant 384 : index
    %100 = vector.load %arg5[%c0_89, %c384] : memref<8x896xf32, #tpu.memory_space<vmem>>, vector<8x128xf32>
    tpu.vector_store %arg5[%c0_89, %c384], %99 {strides = array<i32>} : memref<8x896xf32, #tpu.memory_space<vmem>>, vector<8x128xf32>,
    %c0_90 = arith.constant 0 : index
    %c64_91 = arith.constant 64 : index
    %101 = vector.load %arg7[%c0_90, %c64_91] : memref<8x256xf32, #tpu.memory_space<vmem>>, vector<8x32xf32>
    %c0_92 = arith.constant 0 : index
    %c192_93 = arith.constant 192 : index
    %102 = vector.load %arg6[%c0_92, %c192_93] : memref<8x256xf32, #tpu.memory_space<vmem>>, vector<8x32xf32>
    %c0_94 = arith.constant 0 : index
    %c64_95 = arith.constant 64 : index
    %103 = vector.load %arg7[%c0_94, %c64_95] : memref<8x256xf32, #tpu.memory_space<vmem>>, vector<8x32xf32>
    %c0_96 = arith.constant 0 : index
    %c224_97 = arith.constant 224 : index
    %104 = vector.load %arg6[%c0_96, %c224_97] : memref<8x256xf32, #tpu.memory_space<vmem>>, vector<8x32xf32>
    %c0_98 = arith.constant 0 : index
    %c96_99 = arith.constant 96 : index
    %105 = vector.load %arg7[%c0_98, %c96_99] : memref<8x256xf32, #tpu.memory_space<vmem>>, vector<8x32xf32>
    %c0_100 = arith.constant 0 : index
    %c128_101 = arith.constant 128 : index
    %106 = vector.load %arg6[%c0_100, %c128_101] : memref<8x256xf32, #tpu.memory_space<vmem>>, vector<8x32xf32>
    %c0_102 = arith.constant 0 : index
    %c96_103 = arith.constant 96 : index
    %107 = vector.load %arg7[%c0_102, %c96_103] : memref<8x256xf32, #tpu.memory_space<vmem>>, vector<8x32xf32>
    %c0_104 = arith.constant 0 : index
    %c160_105 = arith.constant 160 : index
    %108 = vector.load %arg6[%c0_104, %c160_105] : memref<8x256xf32, #tpu.memory_space<vmem>>, vector<8x32xf32>
    %109 = tpu.concatenate %101, %103, %105, %107 in 1 : vector<8x32xf32>, vector<8x32xf32>, vector<8x32xf32>, vector<8x32xf32> -> vector<8x128xf32>
    %110 = tpu.concatenate %102, %104, %106, %108 in 1 : vector<8x32xf32>, vector<8x32xf32>, vector<8x32xf32>, vector<8x32xf32> -> vector<8x128xf32>
    %111 = arith.mulf %109, %110 : vector<8x128xf32>
    %c0_106 = arith.constant 0 : index
    %c512 = arith.constant 512 : index
    %112 = vector.load %arg5[%c0_106, %c512] : memref<8x896xf32, #tpu.memory_space<vmem>>, vector<8x128xf32>
    tpu.vector_store %arg5[%c0_106, %c512], %111 {strides = array<i32>} : memref<8x896xf32, #tpu.memory_space<vmem>>, vector<8x128xf32>,
    %c0_107 = arith.constant 0 : index
    %c96_108 = arith.constant 96 : index
    %113 = vector.load %arg7[%c0_107, %c96_108] : memref<8x256xf32, #tpu.memory_space<vmem>>, vector<8x32xf32>
    %c0_109 = arith.constant 0 : index
    %c192_110 = arith.constant 192 : index
    %114 = vector.load %arg6[%c0_109, %c192_110] : memref<8x256xf32, #tpu.memory_space<vmem>>, vector<8x32xf32>
    %c0_111 = arith.constant 0 : index
    %c96_112 = arith.constant 96 : index
    %115 = vector.load %arg7[%c0_111, %c96_112] : memref<8x256xf32, #tpu.memory_space<vmem>>, vector<8x32xf32>
    %c0_113 = arith.constant 0 : index
    %c224_114 = arith.constant 224 : index
    %116 = vector.load %arg6[%c0_113, %c224_114] : memref<8x256xf32, #tpu.memory_space<vmem>>, vector<8x32xf32>
    %c0_115 = arith.constant 0 : index
    %c128_116 = arith.constant 128 : index
    %117 = vector.load %arg7[%c0_115, %c128_116] : memref<8x256xf32, #tpu.memory_space<vmem>>, vector<8x32xf32>
    %c0_117 = arith.constant 0 : index
    %c160_118 = arith.constant 160 : index
    %118 = vector.load %arg6[%c0_117, %c160_118] : memref<8x256xf32, #tpu.memory_space<vmem>>, vector<8x32xf32>
    %c0_119 = arith.constant 0 : index
    %c128_120 = arith.constant 128 : index
    %119 = vector.load %arg7[%c0_119, %c128_120] : memref<8x256xf32, #tpu.memory_space<vmem>>, vector<8x32xf32>
    %c0_121 = arith.constant 0 : index
    %c192_122 = arith.constant 192 : index
    %120 = vector.load %arg6[%c0_121, %c192_122] : memref<8x256xf32, #tpu.memory_space<vmem>>, vector<8x32xf32>
    %121 = tpu.concatenate %113, %115, %117, %119 in 1 : vector<8x32xf32>, vector<8x32xf32>, vector<8x32xf32>, vector<8x32xf32> -> vector<8x128xf32>
    %122 = tpu.concatenate %114, %116, %118, %120 in 1 : vector<8x32xf32>, vector<8x32xf32>, vector<8x32xf32>, vector<8x32xf32> -> vector<8x128xf32>
    %123 = arith.mulf %121, %122 : vector<8x128xf32>
    %c0_123 = arith.constant 0 : index
    %c640 = arith.constant 640 : index
    %124 = vector.load %arg5[%c0_123, %c640] : memref<8x896xf32, #tpu.memory_space<vmem>>, vector<8x128xf32>
    tpu.vector_store %arg5[%c0_123, %c640], %123 {strides = array<i32>} : memref<8x896xf32, #tpu.memory_space<vmem>>, vector<8x128xf32>,
    %c0_124 = arith.constant 0 : index
    %c128_125 = arith.constant 128 : index
    %125 = vector.load %arg7[%c0_124, %c128_125] : memref<8x256xf32, #tpu.memory_space<vmem>>, vector<8x32xf32>
    %c0_126 = arith.constant 0 : index
    %c224_127 = arith.constant 224 : index
    %126 = vector.load %arg6[%c0_126, %c224_127] : memref<8x256xf32, #tpu.memory_space<vmem>>, vector<8x32xf32>
    %c0_128 = arith.constant 0 : index
    %c160_129 = arith.constant 160 : index
    %127 = vector.load %arg7[%c0_128, %c160_129] : memref<8x256xf32, #tpu.memory_space<vmem>>, vector<8x32xf32>
    %c0_130 = arith.constant 0 : index
    %c192_131 = arith.constant 192 : index
    %128 = vector.load %arg6[%c0_130, %c192_131] : memref<8x256xf32, #tpu.memory_space<vmem>>, vector<8x32xf32>
    %c0_132 = arith.constant 0 : index
    %c160_133 = arith.constant 160 : index
    %129 = vector.load %arg7[%c0_132, %c160_133] : memref<8x256xf32, #tpu.memory_space<vmem>>, vector<8x32xf32>
    %c0_134 = arith.constant 0 : index
    %c224_135 = arith.constant 224 : index
    %130 = vector.load %arg6[%c0_134, %c224_135] : memref<8x256xf32, #tpu.memory_space<vmem>>, vector<8x32xf32>
    %c0_136 = arith.constant 0 : index
    %c192_137 = arith.constant 192 : index
    %131 = vector.load %arg7[%c0_136, %c192_137] : memref<8x256xf32, #tpu.memory_space<vmem>>, vector<8x32xf32>
    %c0_138 = arith.constant 0 : index
    %c224_139 = arith.constant 224 : index
    %132 = vector.load %arg6[%c0_138, %c224_139] : memref<8x256xf32, #tpu.memory_space<vmem>>, vector<8x32xf32>
    %133 = tpu.concatenate %125, %127, %129, %131 in 1 : vector<8x32xf32>, vector<8x32xf32>, vector<8x32xf32>, vector<8x32xf32> -> vector<8x128xf32>
    %134 = tpu.concatenate %126, %128, %130, %132 in 1 : vector<8x32xf32>, vector<8x32xf32>, vector<8x32xf32>, vector<8x32xf32> -> vector<8x128xf32>
    %135 = arith.mulf %133, %134 : vector<8x128xf32>
    %c0_140 = arith.constant 0 : index
    %c768 = arith.constant 768 : index
    %136 = vector.load %arg5[%c0_140, %c768] : memref<8x896xf32, #tpu.memory_space<vmem>>, vector<8x128xf32>
    tpu.vector_store %arg5[%c0_140, %c768], %135 {strides = array<i32>} : memref<8x896xf32, #tpu.memory_space<vmem>>, vector<8x128xf32>,
    return
  }
  func.func @transform_0(%arg0: i32) -> (i32, i32) {
    %c0_i32 = arith.constant 0 : i32
    %c0_i32_0 = arith.constant 0 : i32
    return %arg0, %c0_i32 : i32, i32
  }
  func.func @transform_1(%arg0: i32) -> (i32, i32) {
    %c0_i32 = arith.constant 0 : i32
    %c0_i32_0 = arith.constant 0 : i32
    %c0_i32_1 = arith.constant 0 : i32
    return %c0_i32, %c0_i32_0 : i32, i32
  }
  func.func @transform_2(%arg0: i32) -> (i32, i32) {
    %c0_i32 = arith.constant 0 : i32
    %c0_i32_0 = arith.constant 0 : i32
    %c0_i32_1 = arith.constant 0 : i32
    return %c0_i32, %c0_i32_0 : i32, i32
  }
  func.func @transform_3(%arg0: i32) -> (i32, i32) {
    %c0_i32 = arith.constant 0 : i32
    %c0_i32_0 = arith.constant 0 : i32
    %c0_i32_1 = arith.constant 0 : i32
    return %c0_i32, %c0_i32_0 : i32, i32
  }
  func.func @transform_4(%arg0: i32) -> (i32, i32) {
    %c0_i32 = arith.constant 0 : i32
    %c0_i32_0 = arith.constant 0 : i32
    return %arg0, %c0_i32 : i32, i32
  }
}

</mosaic_0001>

<llo_original>
// kernel: tpu_custom_call.1
$region0: #{tpu_custom_call.1}
  #allocation0 [shape = 'u32[]', space=smem, size = 0x4, offset = 0x4, fixed_abs, tag = 'smem constant byte address 0x4 - core index']
  #allocation1 [shape = 'u32[144,128]{1,0:T(1,128)}', space=vmem, size = 0x12000, scoped, tag = 'internal scratch']
  #allocation2 [shape = 'f32[8,256]{1,0:T(8,128)}', space=vmem, size = 0x2000, scoped, tag = 'scratch operand']
  #allocation3 [shape = 'f32[8,256]{1,0:T(8,128)}', space=vmem, size = 0x2000, scoped, tag = 'scratch operand']
  %s0 = inlined_call_operand.vmem [shape: f32[16,256], index: 0, kind: input, shape index: {}]
  %s1 = inlined_call_operand.vmem [shape: f32[256,40], index: 1, kind: input, shape index: {}]
  %s2 = inlined_call_operand.vmem [shape: f32[8,256], index: 2, kind: input, shape index: {}]
  %s3 = inlined_call_operand.hbm [shape: f32[256,256], index: 3, kind: input, shape index: {}]
  %s4 = inlined_call_operand.hbm [shape: f32[16,896], index: 4, kind: output, shape index: {}]
  %s5 = sld [smem:[#allocation0]]
  $region53: #{tpu_custom_call.1} parent=0
    _
  %s7 = ssub.s32 1, %s5
  %s8 = scalar_select 0, %s7, %s5
  $region1: #{tpu_custom_call.1} parent=0
    #allocation4 [shape = 'u8[262144]{0}', space=vmem, size = 0x40000, scoped, tag = 'input window, operand 3, single buffered']
    #allocation5 [shape = 's32[2]{0}', space=sflag, size = 0x8, scoped, tag = 'scoped memory for tpu_custom_call.1']
    #allocation6 [shape = 's32[2]{0}', space=sflag, size = 0x8, scoped, tag = 'scoped memory for tpu_custom_call.1']
    #allocation7 [shape = 'u8[57344]{0}', space=vmem, size = 0xe000, scoped, tag = 'output window, operand 0']
    %9 = vsyncpa [#allocation5], 0
    %10 = vsyncpa [#allocation6], 0
    %s11 = scalar_lea.sflag [#allocation6], 1
    %12 = vsyncpa %s11, 0
    loop: start=0, step=1, limit=4
    $region2: #{tpu_custom_call.1} parent=1 // loop_pre_header
      _
    $region3: #{tpu_custom_call.1} parent=1 // loop_header
      %s14 = sphi 0, %s18
      %p15 = scmp.ge.s32.totalorder %s14, 4
      %s24 = sphi 0, %s26
      %s27 = sphi 0, %s24
      %s28 = sphi 0, %s27
      %s44 = sphi 0, %s28
      %s48 = sphi 0, %s48
      %s50 = sphi 0, %s48
      %s51 = sphi 0, %s50
      %s65 = sphi 0, %s51
      %s69 = sphi 0, %s69
      %s71 = sphi 0, %s69
      %s72 = sphi 0, %s71
      %s86 = sphi 0, %s72
      %s90 = sphi 0, %s90
      %s92 = sphi 0, %s90
      %s93 = sphi 0, %s92
      %s107 = sphi 0, %s93
      %s113 = sphi 0, %s115
      %s116 = sphi 0, %s113
      %s117 = sphi 0, %s116
      %s133 = sphi 0, %s117
    $region4: #{tpu_custom_call.1} parent=1 // loop_header_branch
      %17 = sbr.rel (%p15) target = $region8
    $region5: #{tpu_custom_call.1} parent=1 // loop_body
      %s19 = ssub.s32 %s14, 1
      %s20 = ssub.s32 %s14, 2
      %s21 = sadd.s32 %s14, 1
      %s22 = ssub.s32 %s14, %s21
      %p23 = scmp.eq.s32.totalorder %s22, 0
      %s25 = sadd.s32 %s24, 1
      %s26 = scalar_select %p23, %s24, %s25
      %p29 = pneg %p23
      %p30 = scmp.eq.s32.totalorder %s14, 1
      %p31 = por %p29, %p30
      %p32 = scmp.ne.s32.totalorder %s24, %s27
      %p33 = scmp.eq.s32.totalorder %s14, 0
      %p34 = por %p32, %p33
      %p35 = scmp.ne.s32.totalorder %s24, %s27
      %p36 = scmp.eq.s32.totalorder %s19, 1
      %p37 = por %p35, %p36
      %p38 = scmp.ne.s32.totalorder %s27, %s28
      %p39 = scmp.eq.s32.totalorder %s19, 0
      %p40 = por %p38, %p39
      %p41 = scmp.ne.s32.totalorder %s27, %s28
      %p42 = scmp.eq.s32.totalorder %s20, 1
      %p43 = por %p41, %p42
      %p45 = scmp.ne.s32.totalorder %s28, %s44
      %p46 = scmp.eq.s32.totalorder %s20, 0
      %p47 = por %p45, %p46
      %s49 = sadd.s32 %s48, 1
      %p52 = scmp.eq.s32.totalorder %s14, 1
      %p53 = scmp.ne.s32.totalorder %s48, %s50
      %p54 = scmp.eq.s32.totalorder %s14, 0
      %p55 = por %p53, %p54
      %p56 = scmp.ne.s32.totalorder %s48, %s50
      %p57 = scmp.eq.s32.totalorder %s19, 1
      %p58 = por %p56, %p57
      %p59 = scmp.ne.s32.totalorder %s50, %s51
      %p60 = scmp.eq.s32.totalorder %s19, 0
      %p61 = por %p59, %p60
      %p62 = scmp.ne.s32.totalorder %s50, %s51
      %p63 = scmp.eq.s32.totalorder %s20, 1
      %p64 = por %p62, %p63
      %p66 = scmp.ne.s32.totalorder %s51, %s65
      %p67 = scmp.eq.s32.totalorder %s20, 0
      %p68 = por %p66, %p67
      %s70 = sadd.s32 %s69, 1
      %p73 = scmp.eq.s32.totalorder %s14, 1
      %p74 = scmp.ne.s32.totalorder %s69, %s71
      %p75 = scmp.eq.s32.totalorder %s14, 0
      %p76 = por %p74, %p75
      %p77 = scmp.ne.s32.totalorder %s69, %s71
      %p78 = scmp.eq.s32.totalorder %s19, 1
      %p79 = por %p77, %p78
      %p80 = scmp.ne.s32.totalorder %s71, %s72
      %p81 = scmp.eq.s32.totalorder %s19, 0
      %p82 = por %p80, %p81
      %p83 = scmp.ne.s32.totalorder %s71, %s72
      %p84 = scmp.eq.s32.totalorder %s20, 1
      %p85 = por %p83, %p84
      %p87 = scmp.ne.s32.totalorder %s72, %s86
      %p88 = scmp.eq.s32.totalorder %s20, 0
      %p89 = por %p87, %p88
      %s91 = sadd.s32 %s90, 1
      %p94 = scmp.eq.s32.totalorder %s14, 1
      %p95 = scmp.ne.s32.totalorder %s90, %s92
      %p96 = scmp.eq.s32.totalorder %s14, 0
      %p97 = por %p95, %p96
      %p98 = scmp.ne.s32.totalorder %s90, %s92
      %p99 = scmp.eq.s32.totalorder %s19, 1
      %p100 = por %p98, %p99
      %p101 = scmp.ne.s32.totalorder %s92, %s93
      %p102 = scmp.eq.s32.totalorder %s19, 0
      %p103 = por %p101, %p102
      %p104 = scmp.ne.s32.totalorder %s92, %s93
      %p105 = scmp.eq.s32.totalorder %s20, 1
      %p106 = por %p104, %p105
      %p108 = scmp.ne.s32.totalorder %s93, %s107
      %p109 = scmp.eq.s32.totalorder %s20, 0
      %p110 = por %p108, %p109
      %s111 = ssub.s32 %s14, %s21
      %p112 = scmp.eq.s32.totalorder %s111, 0
      %s114 = sadd.s32 %s113, 1
      %s115 = scalar_select %p112, %s113, %s114
      %p118 = pneg %p112
      %p119 = scmp.eq.s32.totalorder %s14, 1
      %p120 = por %p118, %p119
      %p121 = scmp.ne.s32.totalorder %s113, %s116
      %p122 = scmp.eq.s32.totalorder %s14, 0
      %p123 = por %p121, %p122
      %p124 = scmp.ne.s32.totalorder %s113, %s116
      %p125 = scmp.eq.s32.totalorder %s19, 1
      %p126 = por %p124, %p125
      %p127 = scmp.ne.s32.totalorder %s116, %s117
      %p128 = scmp.eq.s32.totalorder %s19, 0
      %p129 = por %p127, %p128
      %p130 = scmp.ne.s32.totalorder %s116, %s117
      %p131 = scmp.eq.s32.totalorder %s20, 1
      %p132 = por %p130, %p131
      %p134 = scmp.ne.s32.totalorder %s117, %s133
      %p135 = scmp.eq.s32.totalorder %s20, 0
      %p136 = por %p134, %p135
      %p137 = scmp.le.s32.totalorder 1, %s14
      %p138 = scmp.lt.s32.totalorder %s14, 3
      %p139 = pnand %p137, %p138
      %p140 = pneg %p139
      // Predicated region
      $region9: #{tpu_custom_call.1} parent=5 // pred_check
        _
      $region10: #{tpu_custom_call.1} parent=5 // pred_check_branch
        %142 = sbr.rel (%p139) target = $region12
      $region11: #{tpu_custom_call.1} parent=5 // pred_region
        %s143 = ssub.s32 %s14, 1
        // Predicated region
        $region13: #{tpu_custom_call.1} parent=11 // pred_check
          %p144 = pneg %p61
        $region14: #{tpu_custom_call.1} parent=11 // pred_check_branch
          %146 = sbr.rel (%p144) target = $region16
        $region15: #{tpu_custom_call.1} parent=11 // pred_region
          _
        $region16: #{tpu_custom_call.1} parent=11 // pred_fallthru
          _
        // Predicated region
        $region17: #{tpu_custom_call.1} parent=11 // pred_check
          %p147 = pneg %p82
        $region18: #{tpu_custom_call.1} parent=11 // pred_check_branch
          %149 = sbr.rel (%p147) target = $region20
        $region19: #{tpu_custom_call.1} parent=11 // pred_region
          _
        $region20: #{tpu_custom_call.1} parent=11 // pred_fallthru
          _
        // Predicated region
        $region21: #{tpu_custom_call.1} parent=11 // pred_check
          %p150 = pneg %p103
        $region22: #{tpu_custom_call.1} parent=11 // pred_check_branch
          %152 = sbr.rel (%p150) target = $region24
        $region23: #{tpu_custom_call.1} parent=11 // pred_region
          %s154 = ssub.s32 8192, 8192
          %155 = vsyncadd [#allocation5], %s154
          %s156 = sshll.u32 [#allocation4], 4
          %s157 = int_to_ptr.vmem [resolvable:$true] %s156
          %162 = dma.hbm_to_vmem [thread:$0]  %s3, 8192, %s157, [#allocation5], 256, 256, 16
        $region24: #{tpu_custom_call.1} parent=11 // pred_fallthru
          _
      $region12: #{tpu_custom_call.1} parent=5 // pred_fallthru
        _
      %p163 = scmp.lt.s32.totalorder %s14, 2
      // Predicated region
      $region25: #{tpu_custom_call.1} parent=5 // pred_check
        %p164 = pneg %p163
      $region26: #{tpu_custom_call.1} parent=5 // pred_check_branch
        %166 = sbr.rel (%p164) target = $region28
      $region27: #{tpu_custom_call.1} parent=5 // pred_region
        // Predicated region
        $region29: #{tpu_custom_call.1} parent=27 // pred_check
          %p167 = pneg %p34
        $region30: #{tpu_custom_call.1} parent=27 // pred_check_branch
          %169 = sbr.rel (%p167) target = $region32
        $region31: #{tpu_custom_call.1} parent=27 // pred_region
          %p170 = scmp.lt.s32.totalorder %s14, 1
          %s171 = scalar_select %p170, %s14, 1
          %s172 = smul.addr %s171, 2
          %s173 = smul.addr %s172, 8
          %s174 = scalar_lea.vmem %s0, %s173
        $region32: #{tpu_custom_call.1} parent=27 // pred_fallthru
          _
      $region28: #{tpu_custom_call.1} parent=5 // pred_fallthru
        _
      %p175 = scmp.le.s32.totalorder 1, %s14
      %p176 = scmp.lt.s32.totalorder %s14, 3
      %p177 = pnand %p175, %p176
      %p178 = pneg %p177
      // Predicated region
      $region33: #{tpu_custom_call.1} parent=5 // pred_check
        _
      $region34: #{tpu_custom_call.1} parent=5 // pred_check_branch
        %180 = sbr.rel (%p177) target = $region36
      $region35: #{tpu_custom_call.1} parent=5 // pred_region
        %s181 = ssub.s32 %s14, 1
        // Predicated region
        $region37: #{tpu_custom_call.1} parent=35 // pred_check
          %p182 = pneg %p103
        $region38: #{tpu_custom_call.1} parent=35 // pred_check_branch
          %184 = sbr.rel (%p182) target = $region40
        $region39: #{tpu_custom_call.1} parent=35 // pred_region
          %185 = dma.done [#allocation5], 8192
        $region40: #{tpu_custom_call.1} parent=35 // pred_fallthru
          _
        %p186 = scmp.lt.s32.totalorder %s19, 1
        %s187 = scalar_select %p186, %s19, 1
        %s188 = smul.addr %s187, 2
        %s189 = smul.addr %s188, 8
        %s190 = scalar_lea.vmem %s0, %s189
        %p191 = pneg %p40
        %p192 = pneg %p37
        %p193 = pneg %p61
        %p194 = pneg %p58
        %p195 = pneg %p82
        %p196 = pneg %p79
        %p197 = pneg %p103
        %p198 = pneg %p100
        %p199 = pneg %p129
        %p200 = pneg %p126
        %s201 = sand.u32 %s116, 1
        %s202 = scalar_lea.sflag [#allocation6], %s201
        %s203 = sand.u32 %s116, 1
        %s204 = smul.addr %s203, 56
        %s205 = scalar_lea.vmem [#allocation7], %s204
        %p206 = scmp.lt.s32.totalorder %s19, 1
        %s207 = scalar_select %p206, %s19, 1
        %s208 = smul.addr %s207, 2
        %s209 = smul.addr %s208, 8
        %s210 = scalar_lea.vmem %s0, %s209
        %v211 = vld [vmem:[%s210] sm:$0xff]
        %v212 = vld [vmem:[%s210 + $0x8] sm:$0xff]
        %v213 = vld [vmem:[%s1] sm:$0xff]
        %v214 = vld [vmem:[%s1 + $0x8] sm:$0xff]
        %v215 = vld [vmem:[%s1 + $0x10] sm:$0xff]
        %v216 = vld [vmem:[%s1 + $0x18] sm:$0xff]
        %v217 = vld [vmem:[%s1 + $0x20] sm:$0xff]
        %v218 = vld [vmem:[%s1 + $0x28] sm:$0xff]
        %v219 = vld [vmem:[%s1 + $0x30] sm:$0xff]
        %v220 = vld [vmem:[%s1 + $0x38] sm:$0xff]
        %v221 = vld [vmem:[%s1 + $0x40] sm:$0xff]
        %v222 = vld [vmem:[%s1 + $0x48] sm:$0xff]
        %v223 = vld [vmem:[%s1 + $0x50] sm:$0xff]
        %v224 = vld [vmem:[%s1 + $0x58] sm:$0xff]
        %v225 = vld [vmem:[%s1 + $0x60] sm:$0xff]
        %v226 = vld [vmem:[%s1 + $0x68] sm:$0xff]
        %v227 = vld [vmem:[%s1 + $0x70] sm:$0xff]
        %v228 = vld [vmem:[%s1 + $0x78] sm:$0xff]
        %v229 = vld [vmem:[%s1 + $0x80] sm:$0xff]
        %v230 = vld [vmem:[%s1 + $0x88] sm:$0xff]
        %v231 = vld [vmem:[%s1 + $0x90] sm:$0xff]
        %v232 = vld [vmem:[%s1 + $0x98] sm:$0xff]
        %v233 = vld [vmem:[%s1 + $0xa0] sm:$0xff]
        %v234 = vld [vmem:[%s1 + $0xa8] sm:$0xff]
        %v235 = vld [vmem:[%s1 + $0xb0] sm:$0xff]
        %v236 = vld [vmem:[%s1 + $0xb8] sm:$0xff]
        %v237 = vld [vmem:[%s1 + $0xc0] sm:$0xff]
        %v238 = vld [vmem:[%s1 + $0xc8] sm:$0xff]
        %v239 = vld [vmem:[%s1 + $0xd0] sm:$0xff]
        %v240 = vld [vmem:[%s1 + $0xd8] sm:$0xff]
        %v241 = vld [vmem:[%s1 + $0xe0] sm:$0xff]
        %v242 = vld [vmem:[%s1 + $0xe8] sm:$0xff]
        %v243 = vld [vmem:[%s1 + $0xf0] sm:$0xff]
        %v244 = vld [vmem:[%s1 + $0xf8] sm:$0xff]
        %245 = vmatprep.subr.mxu0 0.0
        %246 = vmatpush1.msra.mxu0 %v213
        %247 = vmatprep.subr.mxu0 0.0
        %248 = vmatpush1.msra.mxu0 %v214
        %249 = vmatprep.subr.mxu0 0.0
        %250 = vmatpush1.msra.mxu0 %v215
        %251 = vmatprep.subr.mxu0 0.0
        %252 = vmatpush1.msra.mxu0 %v216
        %253 = vmatprep.subr.mxu0 0.0
        %254 = vmatpush1.msra.mxu0 %v217
        %255 = vmatprep.subr.mxu0 0.0
        %256 = vmatpush1.msra.mxu0 %v218
        %257 = vmatprep.subr.mxu0 0.0
        %258 = vmatpush1.msra.mxu0 %v219
        %259 = vmatprep.subr.mxu0 0.0
        %260 = vmatpush1.msra.mxu0 %v220
        %261 = vmatprep.subr.mxu0 0.0
        %262 = vmatpush1.msra.mxu0 %v221
        %263 = vmatprep.subr.mxu0 0.0
        %264 = vmatpush1.msra.mxu0 %v222
        %265 = vmatprep.subr.mxu0 0.0
        %266 = vmatpush1.msra.mxu0 %v223
        %267 = vmatprep.subr.mxu0 0.0
        %268 = vmatpush1.msra.mxu0 %v224
        %269 = vmatprep.subr.mxu0 0.0
        %270 = vmatpush1.msra.mxu0 %v225
        %271 = vmatprep.subr.mxu0 0.0
        %272 = vmatpush1.msra.mxu0 %v226
        %273 = vmatprep.subr.mxu0 0.0
        %274 = vmatpush1.msra.mxu0 %v227
        %275 = vmatprep.subr.mxu0 0.0
        %276 = vmatpush1.msra.mxu0 %v228
        %277 = vmatprep.subr.mxu0 0.0
        %278 = vmatpush1.msra.mxu0 %v229
        %279 = vmatprep.subr.mxu0 0.0
        %280 = vmatpush1.msra.mxu0 %v230
        %281 = vmatprep.subr.mxu0 0.0
        %282 = vmatpush1.msra.mxu0 %v231
        %283 = vmatprep.subr.mxu0 0.0
        %284 = vmatpush1.msra.mxu0 %v232
        %285 = vmatprep.subr.mxu0 0.0
        %286 = vmatpush1.msra.mxu0 %v233
        %287 = vmatprep.subr.mxu0 0.0
        %288 = vmatpush1.msra.mxu0 %v234
        %289 = vmatprep.subr.mxu0 0.0
        %290 = vmatpush1.msra.mxu0 %v235
        %291 = vmatprep.subr.mxu0 0.0
        %292 = vmatpush1.msra.mxu0 %v236
        %293 = vmatprep.subr.mxu0 0.0
        %294 = vmatpush1.msra.mxu0 %v237
        %295 = vmatprep.subr.mxu0 0.0
        %296 = vmatpush1.msra.mxu0 %v238
        %297 = vmatprep.subr.mxu0 0.0
        %298 = vmatpush1.msra.mxu0 %v239
        %299 = vmatprep.subr.mxu0 0.0
        %300 = vmatpush1.msra.mxu0 %v240
        %301 = vmatprep.subr.mxu0 0.0
        %302 = vmatpush1.msra.mxu0 %v241
        %303 = vmatprep.subr.mxu0 0.0
        %304 = vmatpush1.msra.mxu0 %v242
        %305 = vmatprep.subr.mxu0 0.0
        %306 = vmatpush1.msra.mxu0 %v243
        %307 = vmatprep.subr.mxu0 0.0
        %308 = vmatpush1.msra.mxu0 %v244
        %309 = vmatprep.mubr.f32.mxu0 %v212
        %310 = vmatmul.mubr.f32.gmra.mrb[0].mxu0 %v211
        %v311 = vpop.f32.mrb[0].mxu0
        %v312 = vadd.f32 0.0, %v311
        %v313 = vpop.f32.mrb[0].mxu0
        %314 = vdwg.mxu0
        %vm315 = vcmask 195712
        %v316 = vsel %vm315, %v312, -inf
        %317 = vmax.xlane.f32.xlu0 %v316
        %v318 = vpop.xlane.xlu0 %317
        %v319 = vsub.f32 %v312, %v318
        %v320 = vmul.f32 %v319, 1.442695
        %v321 = vpow.pop %v320
        %323 = vrot.lane.b32.xlu0 %v321, 112
        %v324 = vpop.permute.xlu0 %323
        %vm326 = vcmask 64512
        %v327 = vsel %vm326, %v324, 0.0
        %328 = vadd.xlane.f32.xlu0 %v327
        %v329 = vpop.xlane.xlu0 %328
        %331 = vrot.lane.b32.xlu0 %v312, 112
        %v332 = vpop.permute.xlu0 %331
        %v334 = vmul.f32 %v321, %v332
        %336 = vrot.lane.b32.xlu0 %v334, 112
        %v337 = vpop.permute.xlu0 %336
        %v339 = vsel %vm326, %v337, 0.0
        %340 = vadd.xlane.f32.xlu0 %v339
        %v341 = vpop.xlane.xlu0 %340
        %v342 = vrcp.pop %v329
        %v343 = vmul.f32 %v341, %v342
        %v344 = vmul.f32 %v312, %v343
        %v345 = vadd.f32 %v344, 0.0
        %vm346 = vcmask 261312
        %v347 = vsel %vm346, %v312, -inf
        %348 = vmax.xlane.f32.xlu0 %v347
        %v349 = vpop.xlane.xlu0 %348
        %v350 = vsub.f32 %v312, %v349
        %v351 = vmul.f32 %v350, 1.442695
        %v352 = vpow.pop %v351
        %354 = vrot.lane.b32.xlu0 %v352, 104
        %v355 = vpop.permute.xlu0 %354
        %v357 = vsel %vm326, %v355, 0.0
        %358 = vadd.xlane.f32.xlu0 %v357
        %v359 = vpop.xlane.xlu0 %358
        %360 = vrot.lane.b32.xlu0 %v312, 120
        %v361 = vpop.permute.xlu0 %360
        %v363 = vmul.f32 %v352, %v361
        %365 = vrot.lane.b32.xlu0 %v363, 104
        %v366 = vpop.permute.xlu0 %365
        %v368 = vsel %vm326, %v366, 0.0
        %369 = vadd.xlane.f32.xlu0 %v368
        %v370 = vpop.xlane.xlu0 %369
        %v371 = vrcp.pop %v359
        %v372 = vmul.f32 %v370, %v371
        %v373 = vmul.f32 %v312, %v372
        %375 = vrot.lane.b32.xlu0 %v373, 120
        %v376 = vpop.permute.xlu0 %375
        %v378 = vadd.f32 %v345, %v376
        %vm379 = vcmp.gt.f32.partialorder %v378, 0.0
        %v380 = vsel %vm379, 1.0, 0.0
        %v381 = vld [vmem:[%s2] sm:$0xff]
        %v382 = vld [vmem:[%s2 + $0x8] sm:$0xff]
        %v384 = vsel %vm326, %v380, 0
        %386 = vmatprep.subr.mxu0 %v382
        %387 = vmatpush1.msra.mxu0 %v381
        %388 = vmatprep.subr.mxu0 0.0
        %389 = vmatpush1.msra.mxu0 0.0
        %390 = vmatprep.subr.mxu0 0.0
        %391 = vmatpush1.msra.mxu0 0.0
        %392 = vmatprep.subr.mxu0 0.0
        %393 = vmatpush1.msra.mxu0 0.0
        %394 = vmatprep.subr.mxu0 0.0
        %395 = vmatpush1.msra.mxu0 0.0
        %396 = vmatprep.subr.mxu0 0.0
        %397 = vmatpush1.msra.mxu0 0.0
        %398 = vmatprep.subr.mxu0 0.0
        %399 = vmatpush1.msra.mxu0 0.0
        %400 = vmatprep.subr.mxu0 0.0
        %401 = vmatpush1.msra.mxu0 0.0
        %402 = vmatprep.subr.mxu0 0.0
        %403 = vmatpush1.msra.mxu0 0.0
        %404 = vmatprep.subr.mxu0 0.0
        %405 = vmatpush1.msra.mxu0 0.0
        %406 = vmatprep.subr.mxu0 0.0
        %407 = vmatpush1.msra.mxu0 0.0
        %408 = vmatprep.subr.mxu0 0.0
        %409 = vmatpush1.msra.mxu0 0.0
        %410 = vmatprep.subr.mxu0 0.0
        %411 = vmatpush1.msra.mxu0 0.0
        %412 = vmatprep.subr.mxu0 0.0
        %413 = vmatpush1.msra.mxu0 0.0
        %414 = vmatprep.subr.mxu0 0.0
        %415 = vmatpush1.msra.mxu0 0.0
        %416 = vmatprep.subr.mxu0 0.0
        %417 = vmatpush1.msra.mxu0 0.0
        %418 = vmatprep.subr.mxu0 0.0
        %419 = vmatpush1.msra.mxu0 0.0
        %420 = vmatprep.subr.mxu0 0.0
        %421 = vmatpush1.msra.mxu0 0.0
        %422 = vmatprep.subr.mxu0 0.0
        %423 = vmatpush1.msra.mxu0 0.0
        %424 = vmatprep.subr.mxu0 0.0
        %425 = vmatpush1.msra.mxu0 0.0
        %426 = vmatprep.subr.mxu0 0.0
        %427 = vmatpush1.msra.mxu0 0.0
        %428 = vmatprep.subr.mxu0 0.0
        %429 = vmatpush1.msra.mxu0 0.0
        %430 = vmatprep.subr.mxu0 0.0
        %431 = vmatpush1.msra.mxu0 0.0
        %432 = vmatprep.subr.mxu0 0.0
        %433 = vmatpush1.msra.mxu0 0.0
        %434 = vmatprep.subr.mxu0 0.0
        %435 = vmatpush1.msra.mxu0 0.0
        %436 = vmatprep.subr.mxu0 0.0
        %437 = vmatpush1.msra.mxu0 0.0
        %438 = vmatprep.subr.mxu0 0.0
        %439 = vmatpush1.msra.mxu0 0.0
        %440 = vmatprep.subr.mxu0 0.0
        %441 = vmatpush1.msra.mxu0 0.0
        %442 = vmatprep.subr.mxu0 0.0
        %443 = vmatpush1.msra.mxu0 0.0
        %444 = vmatprep.subr.mxu0 0.0
        %445 = vmatpush1.msra.mxu0 0.0
        %446 = vmatprep.subr.mxu0 0.0
        %447 = vmatpush1.msra.mxu0 0.0
        %448 = vmatprep.subr.mxu0 0.0
        %449 = vmatpush1.msra.mxu0 0.0
        %450 = vmatprep.mubr.f32.mxu0 0.0
        %451 = vmatmul.mubr.f32.gmra.mrb[0].mxu0 %v384
        %v452 = vpop.f32.mrb[0].mxu0
        %v453 = vadd.f32 0.0, %v452
        %v454 = vpop.f32.mrb[0].mxu0
        %v455 = vadd.f32 0.0, %v454
        %456 = vdwg.mxu0
        %v457 = vmul.f32 %v211, %v453
        %v458 = vmul.f32 %v212, %v455
        %459 = vst [vmem:[#allocation2] sm:$0xff] %v457
        %460 = vst [vmem:[#allocation2 + $0x8] sm:$0xff] %v458
        %v461 = vld [vmem:[#allocation2] sm:$0xff]
        %v462 = vld [vmem:[#allocation2 + $0x8] sm:$0xff]
        %v463 = vld [vmem:[#allocation4] sm:$0xff]
        %v464 = vld [vmem:[#allocation4 + $0x8] sm:$0xff]
        %v465 = vld [vmem:[#allocation4 + $0x10] sm:$0xff]
        %v466 = vld [vmem:[#allocation4 + $0x18] sm:$0xff]
        %v467 = vld [vmem:[#allocation4 + $0x20] sm:$0xff]
        %v468 = vld [vmem:[#allocation4 + $0x28] sm:$0xff]
        %v469 = vld [vmem:[#allocation4 + $0x30] sm:$0xff]
        %v470 = vld [vmem:[#allocation4 + $0x38] sm:$0xff]
        %v471 = vld [vmem:[#allocation4 + $0x40] sm:$0xff]
        %v472 = vld [vmem:[#allocation4 + $0x48] sm:$0xff]
        %v473 = vld [vmem:[#allocation4 + $0x50] sm:$0xff]
        %v474 = vld [vmem:[#allocation4 + $0x58] sm:$0xff]
        %v475 = vld [vmem:[#allocation4 + $0x60] sm:$0xff]
        %v476 = vld [vmem:[#allocation4 + $0x68] sm:$0xff]
        %v477 = vld [vmem:[#allocation4 + $0x70] sm:$0xff]
        %v478 = vld [vmem:[#allocation4 + $0x78] sm:$0xff]
        %v479 = vld [vmem:[#allocation4 + $0x80] sm:$0xff]
        %v480 = vld [vmem:[#allocation4 + $0x88] sm:$0xff]
        %v481 = vld [vmem:[#allocation4 + $0x90] sm:$0xff]
        %v482 = vld [vmem:[#allocation4 + $0x98] sm:$0xff]
        %v483 = vld [vmem:[#allocation4 + $0xa0] sm:$0xff]
        %v484 = vld [vmem:[#allocation4 + $0xa8] sm:$0xff]
        %v485 = vld [vmem:[#allocation4 + $0xb0] sm:$0xff]
        %v486 = vld [vmem:[#allocation4 + $0xb8] sm:$0xff]
        %v487 = vld [vmem:[#allocation4 + $0xc0] sm:$0xff]
        %v488 = vld [vmem:[#allocation4 + $0xc8] sm:$0xff]
        %v489 = vld [vmem:[#allocation4 + $0xd0] sm:$0xff]
        %v490 = vld [vmem:[#allocation4 + $0xd8] sm:$0xff]
        %v491 = vld [vmem:[#allocation4 + $0xe0] sm:$0xff]
        %v492 = vld [vmem:[#allocation4 + $0xe8] sm:$0xff]
        %v493 = vld [vmem:[#allocation4 + $0xf0] sm:$0xff]
        %v494 = vld [vmem:[#allocation4 + $0xf8] sm:$0xff]
        %v495 = vld [vmem:[#allocation4 + $0x100] sm:$0xff]
        %v496 = vld [vmem:[#allocation4 + $0x108] sm:$0xff]
        %v497 = vld [vmem:[#allocation4 + $0x110] sm:$0xff]
        %v498 = vld [vmem:[#allocation4 + $0x118] sm:$0xff]
        %v499 = vld [vmem:[#allocation4 + $0x120] sm:$0xff]
        %v500 = vld [vmem:[#allocation4 + $0x128] sm:$0xff]
        %v501 = vld [vmem:[#allocation4 + $0x130] sm:$0xff]
        %v502 = vld [vmem:[#allocation4 + $0x138] sm:$0xff]
        %v503 = vld [vmem:[#allocation4 + $0x140] sm:$0xff]
        %v504 = vld [vmem:[#allocation4 + $0x148] sm:$0xff]
        %v505 = vld [vmem:[#allocation4 + $0x150] sm:$0xff]
        %v506 = vld [vmem:[#allocation4 + $0x158] sm:$0xff]
        %v507 = vld [vmem:[#allocation4 + $0x160] sm:$0xff]
        %v508 = vld [vmem:[#allocation4 + $0x168] sm:$0xff]
        %v509 = vld [vmem:[#allocation4 + $0x170] sm:$0xff]
        %v510 = vld [vmem:[#allocation4 + $0x178] sm:$0xff]
        %v511 = vld [vmem:[#allocation4 + $0x180] sm:$0xff]
        %v512 = vld [vmem:[#allocation4 + $0x188] sm:$0xff]
        %v513 = vld [vmem:[#allocation4 + $0x190] sm:$0xff]
        %v514 = vld [vmem:[#allocation4 + $0x198] sm:$0xff]
        %v515 = vld [vmem:[#allocation4 + $0x1a0] sm:$0xff]
        %v516 = vld [vmem:[#allocation4 + $0x1a8] sm:$0xff]
        %v517 = vld [vmem:[#allocation4 + $0x1b0] sm:$0xff]
        %v518 = vld [vmem:[#allocation4 + $0x1b8] sm:$0xff]
        %v519 = vld [vmem:[#allocation4 + $0x1c0] sm:$0xff]
        %v520 = vld [vmem:[#allocation4 + $0x1c8] sm:$0xff]
        %v521 = vld [vmem:[#allocation4 + $0x1d0] sm:$0xff]
        %v522 = vld [vmem:[#allocation4 + $0x1d8] sm:$0xff]
        %v523 = vld [vmem:[#allocation4 + $0x1e0] sm:$0xff]
        %v524 = vld [vmem:[#allocation4 + $0x1e8] sm:$0xff]
        %v525 = vld [vmem:[#allocation4 + $0x1f0] sm:$0xff]
        %v526 = vld [vmem:[#allocation4 + $0x1f8] sm:$0xff]
        %527 = vmatprep.subr.mxu0 %v464
        %528 = vmatpush1.msra.mxu0 %v463
        %529 = vmatprep.subr.mxu0 %v466
        %530 = vmatpush1.msra.mxu0 %v465
        %531 = vmatprep.subr.mxu0 %v468
        %532 = vmatpush1.msra.mxu0 %v467
        %533 = vmatprep.subr.mxu0 %v470
        %534 = vmatpush1.msra.mxu0 %v469
        %535 = vmatprep.subr.mxu0 %v472
        %536 = vmatpush1.msra.mxu0 %v471
        %537 = vmatprep.subr.mxu0 %v474
        %538 = vmatpush1.msra.mxu0 %v473
        %539 = vmatprep.subr.mxu0 %v476
        %540 = vmatpush1.msra.mxu0 %v475
        %541 = vmatprep.subr.mxu0 %v478
        %542 = vmatpush1.msra.mxu0 %v477
        %543 = vmatprep.subr.mxu0 %v480
        %544 = vmatpush1.msra.mxu0 %v479
        %545 = vmatprep.subr.mxu0 %v482
        %546 = vmatpush1.msra.mxu0 %v481
        %547 = vmatprep.subr.mxu0 %v484
        %548 = vmatpush1.msra.mxu0 %v483
        %549 = vmatprep.subr.mxu0 %v486
        %550 = vmatpush1.msra.mxu0 %v485
        %551 = vmatprep.subr.mxu0 %v488
        %552 = vmatpush1.msra.mxu0 %v487
        %553 = vmatprep.subr.mxu0 %v490
        %554 = vmatpush1.msra.mxu0 %v489
        %555 = vmatprep.subr.mxu0 %v492
        %556 = vmatpush1.msra.mxu0 %v491
        %557 = vmatprep.subr.mxu0 %v494
        %558 = vmatpush1.msra.mxu0 %v493
        %559 = vmatprep.subr.mxu0 %v496
        %560 = vmatpush1.msra.mxu0 %v495
        %561 = vmatprep.subr.mxu0 %v498
        %562 = vmatpush1.msra.mxu0 %v497
        %563 = vmatprep.subr.mxu0 %v500
        %564 = vmatpush1.msra.mxu0 %v499
        %565 = vmatprep.subr.mxu0 %v502
        %566 = vmatpush1.msra.mxu0 %v501
        %567 = vmatprep.subr.mxu0 %v504
        %568 = vmatpush1.msra.mxu0 %v503
        %569 = vmatprep.subr.mxu0 %v506
        %570 = vmatpush1.msra.mxu0 %v505
        %571 = vmatprep.subr.mxu0 %v508
        %572 = vmatpush1.msra.mxu0 %v507
        %573 = vmatprep.subr.mxu0 %v510
        %574 = vmatpush1.msra.mxu0 %v509
        %575 = vmatprep.subr.mxu0 %v512
        %576 = vmatpush1.msra.mxu0 %v511
        %577 = vmatprep.subr.mxu0 %v514
        %578 = vmatpush1.msra.mxu0 %v513
        %579 = vmatprep.subr.mxu0 %v516
        %580 = vmatpush1.msra.mxu0 %v515
        %581 = vmatprep.subr.mxu0 %v518
        %582 = vmatpush1.msra.mxu0 %v517
        %583 = vmatprep.subr.mxu0 %v520
        %584 = vmatpush1.msra.mxu0 %v519
        %585 = vmatprep.subr.mxu0 %v522
        %586 = vmatpush1.msra.mxu0 %v521
        %587 = vmatprep.subr.mxu0 %v524
        %588 = vmatpush1.msra.mxu0 %v523
        %589 = vmatprep.subr.mxu0 %v526
        %590 = vmatpush1.msra.mxu0 %v525
        %591 = vmatprep.mubr.f32.mxu0 %v462
        %592 = vmatmul.mubr.f32.gmra.mrb[0].mxu0 %v461
        %v593 = vpop.f32.mrb[0].mxu0
        %v594 = vadd.f32 0.0, %v593
        %v595 = vpop.f32.mrb[0].mxu0
        %v596 = vadd.f32 0.0, %v595
        %597 = vdwg.mxu0
        %598 = vst [vmem:[#allocation3] sm:$0xff] %v594
        %599 = vst [vmem:[#allocation3 + $0x8] sm:$0xff] %v596
        %v600 = vld [vmem:[#allocation3] sm:$0xff]
        %v601 = vld [vmem:[#allocation2] sm:$0xff]
        %v602 = vld [vmem:[#allocation2 + $0x8] sm:$0xff]
        %604 = vrot.lane.b32.xlu0 %v600, 32
        %v605 = vpop.permute.xlu0 %604
        %607 = vrot.lane.b32.xlu0 %v600, 64
        %v608 = vpop.permute.xlu0 %607
        %610 = vrot.lane.b32.xlu0 %v600, 96
        %v611 = vpop.permute.xlu0 %610
        %vm613 = vcmask 261120
        %v614 = vsel %vm613, %v600, %v605
        %vm615 = vcmask 523264
        %v616 = vsel %vm615, %v614, %v608
        %vm617 = vcmask 785408
        %v618 = vsel %vm617, %v616, %v611
        %620 = vrot.lane.b32.xlu0 %v601, 96
        %v621 = vpop.permute.xlu0 %620
        %624 = vrot.lane.b32.xlu0 %v602, 96
        %v625 = vpop.permute.xlu0 %624
        %v627 = vsel %vm615, %v621, %v621
        %v628 = vsel %vm617, %v627, %v625
        %v629 = vmul.f32 %v618, %v628
        %630 = vst [vmem:[%s205] sm:$0xff] %v629
        %v631 = vld [vmem:[#allocation3] sm:$0xff]
        %v632 = vld [vmem:[#allocation2 + $0x8] sm:$0xff]
        %v633 = vld [vmem:[#allocation2] sm:$0xff]
        %635 = vrot.lane.b32.xlu0 %v631, 32
        %v636 = vpop.permute.xlu0 %635
        %638 = vrot.lane.b32.xlu0 %v631, 64
        %v639 = vpop.permute.xlu0 %638
        %v641 = vsel %vm613, %v631, %v636
        %v642 = vsel %vm615, %v641, %v639
        %v643 = vsel %vm617, %v642, %v639
        %645 = vrot.lane.b32.xlu0 %v632, 96
        %v646 = vpop.permute.xlu0 %645
        %649 = vrot.lane.b32.xlu0 %v633, 32
        %v650 = vpop.permute.xlu0 %649
        %v652 = vsel %vm615, %v646, %v646
        %v653 = vsel %vm617, %v652, %v650
        %v654 = vmul.f32 %v643, %v653
        %655 = vst [vmem:[%s205 + $0x8] sm:$0xff] %v654
        %v656 = vld [vmem:[#allocation3] sm:$0xff]
        %v657 = vld [vmem:[#allocation2] sm:$0xff]
        %v658 = vld [vmem:[#allocation2 + $0x8] sm:$0xff]
        %660 = vrot.lane.b32.xlu0 %v656, 96
        %v661 = vpop.permute.xlu0 %660
        %663 = vrot.lane.b32.xlu0 %v656, 32
        %v664 = vpop.permute.xlu0 %663
        %666 = vrot.lane.b32.xlu0 %v656, 64
        %v667 = vpop.permute.xlu0 %666
        %v669 = vsel %vm613, %v661, %v656
        %v670 = vsel %vm615, %v669, %v664
        %v671 = vsel %vm617, %v670, %v667
        %673 = vrot.lane.b32.xlu0 %v657, 32
        %v674 = vpop.permute.xlu0 %673
        %677 = vrot.lane.b32.xlu0 %v658, 32
        %v678 = vpop.permute.xlu0 %677
        %v680 = vsel %vm613, %v674, %v678
        %v681 = vsel %vm615, %v680, %v678
        %v682 = vsel %vm617, %v681, %v678
        %v683 = vmul.f32 %v671, %v682
        %684 = vst [vmem:[%s205 + $0x10] sm:$0xff] %v683
        %v685 = vld [vmem:[#allocation3] sm:$0xff]
        %v686 = vld [vmem:[#allocation2 + $0x8] sm:$0xff]
        %v687 = vld [vmem:[#allocation2] sm:$0xff]
        %689 = vrot.lane.b32.xlu0 %v685, 96
        %v690 = vpop.permute.xlu0 %689
        %692 = vrot.lane.b32.xlu0 %v685, 32
        %v693 = vpop.permute.xlu0 %692
        %v695 = vsel %vm615, %v690, %v685
        %v696 = vsel %vm617, %v695, %v693
        %698 = vrot.lane.b32.xlu0 %v686, 32
        %v699 = vpop.permute.xlu0 %698
        %702 = vrot.lane.b32.xlu0 %v687, 64
        %v703 = vpop.permute.xlu0 %702
        %705 = vrot.lane.b32.xlu0 %v686, 64
        %v706 = vpop.permute.xlu0 %705
        %v708 = vsel %vm613, %v699, %v703
        %v709 = vsel %vm615, %v708, %v706
        %v710 = vsel %vm617, %v709, %v706
        %v711 = vmul.f32 %v696, %v710
        %712 = vst [vmem:[%s205 + $0x18] sm:$0xff] %v711
        %v713 = vld [vmem:[#allocation3] sm:$0xff]
        %v714 = vld [vmem:[#allocation2 + $0x8] sm:$0xff]
        %716 = vrot.lane.b32.xlu0 %v713, 64
        %v717 = vpop.permute.xlu0 %716
        %719 = vrot.lane.b32.xlu0 %v713, 96
        %v720 = vpop.permute.xlu0 %719
        %v722 = vsel %vm613, %v717, %v720
        %v723 = vsel %vm615, %v722, %v720
        %v724 = vsel %vm617, %v723, %v713
        %726 = vrot.lane.b32.xlu0 %v714, 64
        %v727 = vpop.permute.xlu0 %726
        %v729 = vsel %vm615, %v727, %v727
        %v730 = vsel %vm617, %v729, %v727
        %v731 = vmul.f32 %v724, %v730
        %732 = vst [vmem:[%s205 + $0x20] sm:$0xff] %v731
        %v733 = vld [vmem:[#allocation3] sm:$0xff]
        %v734 = vld [vmem:[#allocation2 + $0x8] sm:$0xff]
        %v735 = vld [vmem:[#allocation3 + $0x8] sm:$0xff]
        %737 = vrot.lane.b32.xlu0 %v733, 32
        %v738 = vpop.permute.xlu0 %737
        %740 = vrot.lane.b32.xlu0 %v733, 64
        %v741 = vpop.permute.xlu0 %740
        %744 = vrot.lane.b32.xlu0 %v735, 64
        %v745 = vpop.permute.xlu0 %744
        %747 = vrot.lane.b32.xlu0 %v735, 96
        %v748 = vpop.permute.xlu0 %747
        %v750 = vsel %vm613, %v738, %v741
        %v751 = vsel %vm615, %v750, %v745
        %v752 = vsel %vm617, %v751, %v748
        %754 = vrot.lane.b32.xlu0 %v734, 64
        %v755 = vpop.permute.xlu0 %754
        %757 = vrot.lane.b32.xlu0 %v734, 32
        %v758 = vpop.permute.xlu0 %757
        %v760 = vsel %vm615, %v755, %v758
        %v761 = vsel %vm617, %v760, %v758
        %v762 = vmul.f32 %v752, %v761
        %763 = vst [vmem:[%s205 + $0x28] sm:$0xff] %v762
        %v764 = vld [vmem:[#allocation3 + $0x8] sm:$0xff]
        %v765 = vld [vmem:[#allocation2 + $0x8] sm:$0xff]
        %767 = vrot.lane.b32.xlu0 %v764, 32
        %v768 = vpop.permute.xlu0 %767
        %v770 = vsel %vm615, %v764, %v768
        %v771 = vsel %vm617, %v770, %v768
        %773 = vrot.lane.b32.xlu0 %v765, 32
        %v774 = vpop.permute.xlu0 %773
        %776 = vrot.lane.b32.xlu0 %v765, 96
        %v777 = vpop.permute.xlu0 %776
        %v779 = vsel %vm613, %v774, %v777
        %v780 = vsel %vm615, %v779, %v777
        %v781 = vsel %vm617, %v780, %v765
        %v782 = vmul.f32 %v771, %v781
        %783 = vst [vmem:[%s205 + $0x30] sm:$0xff] %v782
        %s784 = sand.u32 %s116, 1
        %s785 = scalar_lea.sflag [#allocation6], %s784
        %s786 = sand.u32 %s116, 1
        %s787 = smul.addr %s786, 56
        %s788 = scalar_lea.vmem [#allocation7], %s787
        // Predicated region
        $region41: #{tpu_custom_call.1} parent=35 // pred_check
          %p789 = pneg %p126
        $region42: #{tpu_custom_call.1} parent=35 // pred_check_branch
          %791 = sbr.rel (%p789) target = $region44
        $region43: #{tpu_custom_call.1} parent=35 // pred_region
          %s793 = ssub.s32 896, 896
          %794 = vsyncadd %s785, %s793
          %s795 = smul.addr %s19, 7
          %s796 = smul.addr %s795, 128
          %s797 = scalar_lea.hbm %s4, %s796
          %s799 = sshll.u32 %s788, 4
          %s800 = int_to_ptr.vmem [resolvable:$true] %s799
          %802 = dma.vmem_to_hbm [thread:$0]  %s800, 896, %s797, %s785
        $region44: #{tpu_custom_call.1} parent=35 // pred_fallthru
          _
      $region36: #{tpu_custom_call.1} parent=5 // pred_fallthru
        _
      %p803 = scmp.le.s32.totalorder 2, %s14
      // Predicated region
      $region45: #{tpu_custom_call.1} parent=5 // pred_check
        %p804 = pneg %p803
      $region46: #{tpu_custom_call.1} parent=5 // pred_check_branch
        %806 = sbr.rel (%p804) target = $region48
      $region47: #{tpu_custom_call.1} parent=5 // pred_region
        %s807 = ssub.s32 %s14, 2
        // Predicated region
        $region49: #{tpu_custom_call.1} parent=47 // pred_check
          %p808 = pneg %p132
        $region50: #{tpu_custom_call.1} parent=47 // pred_check_branch
          %810 = sbr.rel (%p808) target = $region52
        $region51: #{tpu_custom_call.1} parent=47 // pred_region
          %s811 = sand.u32 %s117, 1
          %s812 = scalar_lea.sflag [#allocation6], %s811
          %s813 = sand.u32 %s117, 1
          %s814 = smul.addr %s813, 56
          %s815 = scalar_lea.vmem [#allocation7], %s814
          %816 = dma.done %s812, 896
        $region52: #{tpu_custom_call.1} parent=47 // pred_fallthru
          _
      $region48: #{tpu_custom_call.1} parent=5 // pred_fallthru
        _
    $region6: #{tpu_custom_call.1} parent=1 // loop_footer
      %s18 = sadd.s32 1, %s14
    $region7: #{tpu_custom_call.1} parent=1 // loop_footer_branch
      %13 = sbr.rel target = $region3
    $region8: #{tpu_custom_call.1} parent=1 // loop_exit
      _
    %817 = vsyncpa [#allocation5], 1
    %s818 = scalar_lea.sflag [#allocation5], 1
    %819 = vsyncpa %s818, 1
    %820 = vsyncpa [#allocation6], 1
    %s821 = scalar_lea.sflag [#allocation6], 1
    %822 = vsyncpa %s821, 1

</llo_original>
